<compile_context>
chip_gen: v5e
topology: v5e:2x2
jax: 0.10.0
libtpu: 0.0.40
codegen_flags: <defaults>
</compile_context>

<pallas_src>
import functools
import numpy as np

import jax
import jax.numpy as jnp
from jax import lax
from jax.experimental import pallas as pl
from jax.experimental.pallas import tpu as pltpu


# ----------------------------------------------------------------------------
# helpers
# ----------------------------------------------------------------------------
def _round_up(a, b):
    return (a + b - 1) // b * b


def _pick_tile(n, max_tile, align):
    """Pad n to `align`, pick a tile <= max_tile, pad again so the tile divides."""
    n_pad = _round_up(max(n, align), align)
    tile = min(max_tile, n_pad)
    n_pad = _round_up(n_pad, tile)
    return n_pad, tile


# ----------------------------------------------------------------------------
# generic projection kernel (RGCN messages):  msg_all = x @ W_stacked  (bf16 out)
# ----------------------------------------------------------------------------
def _proj_kernel(x_ref, w_ref, o_ref):
    o_ref[...] = jnp.dot(x_ref[...].astype(jnp.bfloat16),
                         w_ref[...].astype(jnp.bfloat16),
                         preferred_element_type=jnp.float32).astype(o_ref.dtype)


def _project(x_pad, w_all, row_tile, out_dtype=jnp.bfloat16):
    n_pad, fin = x_pad.shape
    hdim = w_all.shape[1]
    return pl.pallas_call(
        _proj_kernel,
        out_shape=jax.ShapeDtypeStruct((n_pad, hdim), out_dtype),
        grid=(n_pad // row_tile,),
        in_specs=[pl.BlockSpec((row_tile, fin), lambda i: (i, 0)),
                  pl.BlockSpec((fin, hdim), lambda i: (0, 0))],
        out_specs=pl.BlockSpec((row_tile, hdim), lambda i: (i, 0)),
        compiler_params=pltpu.CompilerParams(dimension_semantics=("parallel",)),
    )(x_pad, w_all)


# ----------------------------------------------------------------------------
# GAT projection kernel: hd = x @ W_all (bf16), el_t = A_l·hd^T, er = hd·A_r
# ----------------------------------------------------------------------------
def _gat_proj_kernel(x_ref, w_ref, al_ref, ar_ref, hd_ref, elt_ref, er_ref):
    hd = jnp.dot(x_ref[...].astype(jnp.bfloat16), w_ref[...].astype(jnp.bfloat16),
                 preferred_element_type=jnp.float32)                 # (rows, H*D) f32
    hd_ref[...] = hd.astype(jnp.bfloat16)
    # el_t[h, n] = <attn_l[h], hd[n, head h]>  (fused-head block layout of A_l/A_r)
    elt_ref[...] = lax.dot_general(al_ref[...], hd, (((1,), (1,)), ((), ())),
                                   preferred_element_type=jnp.float32)      # (H, rows)
    er_ref[...] = jnp.dot(hd, ar_ref[...], preferred_element_type=jnp.float32)  # (rows, H)


def _gat_project(x_pad, w_all, a_l, a_r, row_tile, num_heads):
    n_pad, fin = x_pad.shape
    hdim = w_all.shape[1]
    return pl.pallas_call(
        _gat_proj_kernel,
        out_shape=(jax.ShapeDtypeStruct((n_pad, hdim), jnp.bfloat16),
                   jax.ShapeDtypeStruct((num_heads, n_pad), jnp.float32),
                   jax.ShapeDtypeStruct((n_pad, num_heads), jnp.float32)),
        grid=(n_pad // row_tile,),
        in_specs=[pl.BlockSpec((row_tile, fin), lambda i: (i, 0)),
                  pl.BlockSpec((fin, hdim), lambda i: (0, 0)),
                  pl.BlockSpec((num_heads, hdim), lambda i: (0, 0)),
                  pl.BlockSpec((hdim, num_heads), lambda i: (0, 0))],
        out_specs=[pl.BlockSpec((row_tile, hdim), lambda i: (i, 0)),
                   pl.BlockSpec((num_heads, row_tile), lambda i: (0, i)),
                   pl.BlockSpec((row_tile, num_heads), lambda i: (i, 0))],
        compiler_params=pltpu.CompilerParams(dimension_semantics=("parallel",)),
    )(x_pad, w_all, a_l, a_r)


# ----------------------------------------------------------------------------
# GAT attention kernel: flash-style online softmax over src tiles
# ----------------------------------------------------------------------------
def _gat_attn_kernel(adj_ref, hds_ref, er_ref, elt_ref, b_ref, o_ref,
                     m_ref, l_ref, acc_ref, *, num_heads, head_dim):
    k = pl.program_id(1)
    last = pl.num_programs(1) - 1
    neg_big = jnp.float32(-1e30)

    @pl.when(k == 0)
    def _init():
        m_ref[...] = jnp.full_like(m_ref, neg_big)
        l_ref[...] = jnp.zeros_like(l_ref)
        acc_ref[...] = jnp.zeros_like(acc_ref)

    adj_f = adj_ref[...].astype(jnp.float32)      # (bd, bs) 0/1 (bf16 in HBM)
    mask = adj_f > 0.0                            # hoisted: shared by all heads
    hd_s = hds_ref[...]                           # (bs, H*D) bf16
    er = er_ref[...]                              # (bd, H)   f32
    elt = elt_ref[...]                            # (H, bs)   f32

    for h in range(num_heads):
        sl = slice(h * head_dim, (h + 1) * head_dim)
        e = er[:, h:h + 1] + elt[h:h + 1, :]      # (bd, bs) f32
        e = jnp.maximum(e, 0.2 * e)               # LeakyReLU(0.2)
        e = jnp.where(mask, e, neg_big)           # mask non-edges

        m_prev = m_ref[:, h:h + 1]                # (bd, 1)
        m_new = jnp.maximum(m_prev, jnp.max(e, axis=-1, keepdims=True))
        p = jnp.exp(e - m_new) * adj_f            # masked unnormalised probs
        corr = jnp.exp(m_prev - m_new)            # (bd, 1) rescale old state

        l_ref[:, h:h + 1] = corr * l_ref[:, h:h + 1] + jnp.sum(p, axis=-1, keepdims=True)
        acc_ref[:, sl] = corr * acc_ref[:, sl] + jnp.dot(
            p.astype(jnp.bfloat16), hd_s[:, sl], preferred_element_type=jnp.float32)
        m_ref[:, h:h + 1] = m_new

    @pl.when(k == last)
    def _finalize():
        b = b_ref[...]
        for h in range(num_heads):
            sl = slice(h * head_dim, (h + 1) * head_dim)
            l_h = l_ref[:, h:h + 1]
            inv = pl.reciprocal(jnp.where(l_h > 0, l_h, 1.0), approx=True)  # zero-in-degree safe
            agg = acc_ref[:, sl] * inv + b[:, sl]
            # ELU; exp of the clamped value avoids inf on the discarded branch.
            o_ref[:, sl] = jnp.where(agg > 0, agg, jnp.exp(jnp.minimum(agg, 0.0)) - 1.0)


def gat_forward(x, adj01, w, attn_l, attn_r, bias, *, num_heads, head_dim, num_dst,
                dst_tile=256, src_tile=512):
    """x: (N, Fin) f32 combined features; adj01: (num_dst, N) np.float32 0/1 adjacency."""
    n, fin = x.shape
    hdim = num_heads * head_dim

    nd_pad, bd = _pick_tile(num_dst, dst_tile, 8)
    n_pad, bs = _pick_tile(max(n, nd_pad), src_tile, 128)

    x_pad = jnp.zeros((n_pad, fin), jnp.float32).at[:n].set(x)
    adj_pad = np.zeros((nd_pad, n_pad), np.float32)
    adj_pad[:num_dst, :n] = np.asarray(adj01)
    adj_bf = jnp.asarray(adj_pad).astype(jnp.bfloat16)      # bf16 in HBM: halves DMA

    # fused-head parameter layouts (tiny, host side)
    w_all = jnp.transpose(w, (1, 0, 2)).reshape(fin, hdim)          # (Fin, H*D)
    attn_l_np = np.asarray(attn_l, np.float32)
    attn_r_np = np.asarray(attn_r, np.float32)
    a_l = np.zeros((num_heads, hdim), np.float32)
    a_r = np.zeros((hdim, num_heads), np.float32)
    for h in range(num_heads):
        a_l[h, h * head_dim:(h + 1) * head_dim] = attn_l_np[h]
        a_r[h * head_dim:(h + 1) * head_dim, h] = attn_r_np[h]
    a_l = jnp.asarray(a_l)
    a_r = jnp.asarray(a_r)
    b_row = jnp.asarray(bias, jnp.float32).reshape(1, hdim)

    # fused projection: hd (bf16), el_t (H, N), er (N, H) — computed once per node
    hd_bf, elt, er = _gat_project(x_pad, w_all, a_l, a_r, bs, num_heads)

    kernel = functools.partial(_gat_attn_kernel,
                               num_heads=num_heads, head_dim=head_dim)
    out = pl.pallas_call(
        kernel,
        out_shape=jax.ShapeDtypeStruct((nd_pad, hdim), jnp.float32),
        grid=(nd_pad // bd, n_pad // bs),
        in_specs=[
            pl.BlockSpec((bd, bs), lambda i, k: (i, k)),             # adjacency tile
            pl.BlockSpec((bs, hdim), lambda i, k: (k, 0)),           # hd (src view, bf16)
            pl.BlockSpec((bd, num_heads), lambda i, k: (i, 0)),      # er (dst logits)
            pl.BlockSpec((num_heads, bs), lambda i, k: (0, k)),      # el^T (src logits)
            pl.BlockSpec((1, hdim), lambda i, k: (0, 0)),            # bias row
        ],
        out_specs=pl.BlockSpec((bd, hdim), lambda i, k: (i, 0)),     # lane-dense output
        scratch_shapes=[pltpu.VMEM((bd, num_heads), jnp.float32),    # m (per head)
                        pltpu.VMEM((bd, num_heads), jnp.float32),    # l (softmax denom)
                        pltpu.VMEM((bd, hdim), jnp.float32)],        # acc
        compiler_params=pltpu.CompilerParams(
            dimension_semantics=("parallel", "arbitrary")),
    )(adj_bf, hd_bf, er, elt, b_row)
    return out[:num_dst]


# ----------------------------------------------------------------------------
# RGCN aggregation kernel: per-relation masked aggregation of precomputed messages
# ----------------------------------------------------------------------------
def _rgcn_kernel(adj_ref, msg_ref, xd_ref, wloop_ref, b_ref, o_ref, acc_ref,
                 *, num_rels, fout):
    k = pl.program_id(1)
    last = pl.num_programs(1) - 1

    @pl.when(k == 0)
    def _init():
        acc_ref[...] = jnp.zeros_like(acc_ref)

    msg = msg_ref[...]                                     # (bs, R*Fout) bf16
    acc = acc_ref[...]
    for r in range(num_rels):
        acc = acc + jnp.dot(adj_ref[r], msg[:, r * fout:(r + 1) * fout],
                            preferred_element_type=jnp.float32)
    acc_ref[...] = acc

    @pl.when(k == last)
    def _finalize():
        xd = xd_ref[...].astype(jnp.bfloat16)
        wl = wloop_ref[...].astype(jnp.bfloat16)
        o_ref[...] = (acc_ref[...]
                      + jnp.dot(xd, wl, preferred_element_type=jnp.float32)
                      + b_ref[...])


def rgcn_forward(x, adj_rel, w_rel, loop_w, bias, *, num_dst, out_dim,
                 dst_tile=256, src_tile=512):
    """x: (N, Fin) f32; adj_rel: (R, num_dst, N) np.float32 edge-multiplicity counts;
       w_rel: (R, Fin, Fout) basis-combined relation weights."""
    n, fin = x.shape
    num_rels = adj_rel.shape[0]

    nd_pad, bd = _pick_tile(num_dst, dst_tile, 8)
    n_pad, bs = _pick_tile(max(n, nd_pad), src_tile, 128)

    x_pad = jnp.zeros((n_pad, fin), jnp.float32).at[:n].set(x)
    adj_pad = np.zeros((num_rels, nd_pad, n_pad), np.float32)
    adj_pad[:, :num_dst, :n] = np.asarray(adj_rel)
    adj_bf = jnp.asarray(adj_pad).astype(jnp.bfloat16)

    w_stacked = jnp.transpose(w_rel, (1, 0, 2)).reshape(fin, num_rels * out_dim)
    b_row = jnp.asarray(bias, jnp.float32).reshape(1, out_dim)

    # all relation messages computed once per node (bf16 in HBM)
    msg_all = _project(x_pad, w_stacked, bs)                # (n_pad, R*Fout)

    kernel = functools.partial(_rgcn_kernel, num_rels=num_rels, fout=out_dim)
    out = pl.pallas_call(
        kernel,
        out_shape=jax.ShapeDtypeStruct((nd_pad, out_dim), jnp.float32),
        grid=(nd_pad // bd, n_pad // bs),
        in_specs=[
            pl.BlockSpec((num_rels, bd, bs), lambda i, k: (0, i, k)),   # per-rel adj tile
            pl.BlockSpec((bs, num_rels * out_dim), lambda i, k: (k, 0)),  # messages (src view)
            pl.BlockSpec((bd, fin), lambda i, k: (i, 0)),               # x (dst view, self-loop)
            pl.BlockSpec((fin, out_dim), lambda i, k: (0, 0)),
            pl.BlockSpec((1, out_dim), lambda i, k: (0, 0)),
        ],
        out_specs=pl.BlockSpec((bd, out_dim), lambda i, k: (i, 0)),
        scratch_shapes=[pltpu.VMEM((bd, out_dim), jnp.float32)],
        compiler_params=pltpu.CompilerParams(
            dimension_semantics=("parallel", "arbitrary")),
    )(adj_bf, msg_all, x_pad, loop_w, b_row)
    return out[:num_dst]


# ----------------------------------------------------------------------------
# DGL-block -> homogeneous-graph construction glue (host-side NumPy, mirrors
# the torch.unique + index-remapping code of the PyTorch forward)
# ----------------------------------------------------------------------------
def build_combined_graph(relations, block_edges, dst_ntype, dst_feat, src_feats):
    num_dst = dst_feat.shape[0]
    dst_rels = [r for r in relations if r[2] == dst_ntype]

    combined_src, combined_dst = [], []
    combined_feats = [np.asarray(dst_feat)]
    rel_slices = []                       # (global_rel_idx, start, end) per dst relation
    shift_index = num_dst
    off = 0
    for rel in dst_rels:
        rel_idx = relations.index(rel)
        src_ntype = rel[0]
        src, dst = block_edges[rel]
        src = np.asarray(src)
        dst = np.asarray(dst)
        src_indices = np.unique(src).tolist()
        remap = {int(sid): i + shift_index for i, sid in enumerate(src_indices)}
        map_src = np.array([remap[int(s)] for s in src], dtype=np.int32)
        combined_src.append(map_src)
        combined_dst.append(dst.astype(np.int32))
        combined_feats.append(np.asarray(src_feats[src_ntype])[src_indices])
        rel_slices.append((rel_idx, off, off + map_src.shape[0]))
        shift_index += len(src_indices)
        off += map_src.shape[0]

    return dict(
        num_dst=num_dst,
        dst_rels=dst_rels,
        rel_slices=rel_slices,
        src=np.concatenate(combined_src),
        dst=np.concatenate(combined_dst),
        feats=np.concatenate(combined_feats, axis=0).astype(np.float32),
    )


def aggregate_module_forward(module_name, params, relations, block_edges,
                             dst_ntype, dst_feat, src_feats):
    g = build_combined_graph(relations, block_edges, dst_ntype, dst_feat, src_feats)
    num_dst = g["num_dst"]
    n_total = g["feats"].shape[0]
    x = jnp.asarray(g["feats"])

    if module_name == "GAT":
        # NOTE: the dense 0/1 adjacency matches DGL's per-edge softmax only when
        # there are no duplicate (src, dst) edges (true for this synthetic block).
        adj = np.zeros((num_dst, n_total), np.float32)
        adj[g["dst"], g["src"]] = 1.0
        z = gat_forward(x, adj, params["gat_w"], params["attn_l"], params["attn_r"],
                        params["gat_bias"], num_heads=params["num_heads"],
                        head_dim=params["head_dim"], num_dst=num_dst)
    elif module_name == "RGCN":
        num_rels = len(g["dst_rels"])
        adj_rel = np.zeros((num_rels, num_dst, n_total), np.float32)
        global_idx = []
        for r, (rel_idx, s0, s1) in enumerate(g["rel_slices"]):
            np.add.at(adj_rel, (r, g["dst"][s0:s1], g["src"][s0:s1]), 1.0)  # keep multiplicity
            global_idx.append(rel_idx)
        # basis regularizer: W_r = sum_b comp[r, b] * basis_b  (precomputed host/XLA)
        comp_sel = params["rgcn_comp"][np.asarray(global_idx)]
        w_rel = jnp.einsum("rb,bfo->rfo", comp_sel, params["rgcn_bases"])
        z = rgcn_forward(x, adj_rel, w_rel, params["rgcn_loop_w"], params["rgcn_bias"],
                         num_dst=num_dst, out_dim=params["out_dim"])
    else:
        raise ValueError(module_name)

    att_sc = jnp.ones((len(g["dst_rels"]),), jnp.float32)
    return z, att_sc


# ----------------------------------------------------------------------------
# pure-jnp f32 references (dense, untiled) for correctness checking
# ----------------------------------------------------------------------------
def _gat_reference(x, adj, w, attn_l, attn_r, bias, num_dst):
    hd = jnp.einsum("nf,hfd->nhd", x, w)
    el = jnp.einsum("nhd,hd->nh", hd, attn_l)
    er = jnp.einsum("nhd,hd->nh", hd[:num_dst], attn_r)
    e = er[:, None, :] + el[None, :, :]                       # (ND, N, H)
    e = jnp.where(e > 0, e, 0.2 * e)
    e = jnp.where((adj > 0)[:, :, None], e, -1e30)
    m = jnp.max(e, axis=1, keepdims=True)
    p = jnp.exp(e - m) * adj[:, :, None]
    denom = jnp.sum(p, axis=1, keepdims=True)
    denom = jnp.where(denom > 0, denom, 1.0)
    alpha = p / denom
    agg = jnp.einsum("dnh,nhk->dhk", alpha, hd) + bias[None, :, :]
    out = jnp.where(agg > 0, agg, jnp.exp(jnp.minimum(agg, 0.0)) - 1.0)
    return out.reshape(num_dst, -1)


def _rgcn_reference(x, adj_rel, w_rel, loop_w, bias, num_dst):
    msg = jnp.einsum("nf,rfo->rno", x, w_rel)
    agg = jnp.einsum("rdn,rno->do", adj_rel, msg)
    return agg + x[:num_dst] @ loop_w + bias


# ----------------------------------------------------------------------------
if __name__ == "__main__":
    relations = [("author", "writes", "paper"),
                 ("venue", "publishes", "paper"),
                 ("paper", "cites", "author")]
    dst_ntype = "paper"
    in_dim, out_dim, num_heads = 32, 16, 2
    num_dst = 6

    # Synthetic DGL "block": per-relation edge lists (src ids local to src type).
    block_edges = {
        ("author", "writes", "paper"): (np.array([0, 2, 2, 5, 7, 1, 3]),
                                        np.array([0, 0, 1, 2, 3, 4, 5])),
        ("venue", "publishes", "paper"): (np.array([1, 1, 4, 0]),
                                          np.array([0, 2, 3, 5])),
    }
    num_src_nodes = {"author": 8, "venue": 5}

    key = jax.random.PRNGKey(0)
    ks = jax.random.split(key, 12)
    dst_feat = jax.random.normal(ks[0], (num_dst, in_dim), jnp.float32)
    src_feats = {
        "author": jax.random.normal(ks[1], (num_src_nodes["author"], in_dim), jnp.float32),
        "venue": jax.random.normal(ks[2], (num_src_nodes["venue"], in_dim), jnp.float32),
    }

    params = {
        "num_heads": num_heads,
        "head_dim": out_dim,
        "out_dim": out_dim,
        # GATConv params (fc has no bias; bias added post-aggregation)
        "gat_w": jax.random.normal(ks[3], (num_heads, in_dim, out_dim), jnp.float32) * 0.1,
        "attn_l": jax.random.normal(ks[4], (num_heads, out_dim), jnp.float32) * 0.1,
        "attn_r": jax.random.normal(ks[5], (num_heads, out_dim), jnp.float32) * 0.1,
        "gat_bias": jax.random.normal(ks[9], (num_heads, out_dim), jnp.float32) * 0.1,
        # RelGraphConv (basis regularizer, num_bases=2) params
        "rgcn_bases": jax.random.normal(ks[6], (2, in_dim, out_dim), jnp.float32) * 0.1,
        "rgcn_comp": jax.random.normal(ks[7], (len(relations), 2), jnp.float32),
        "rgcn_loop_w": jax.random.normal(ks[8], (in_dim, out_dim), jnp.float32) * 0.1,
        "rgcn_bias": jax.random.normal(ks[10], (1, out_dim), jnp.float32) * 0.1,
    }

    # TODO(synk): feat_drop / attn_drop are training-time stochastic ops; eval mode (identity) here.
    dst_z_gat, att_sc = aggregate_module_forward(
        "GAT", params, relations, block_edges, dst_ntype, dst_feat, src_feats)
    dst_z_rgcn, _ = aggregate_module_forward(
        "RGCN", params, relations, block_edges, dst_ntype, dst_feat, src_feats)
    jax.block_until_ready((dst_z_gat, dst_z_rgcn, att_sc))

    # --- correctness check vs. dense f32 jnp reference (loose tol: bf16 operands) ---
    g = build_combined_graph(relations, block_edges, dst_ntype, dst_feat, src_feats)
    x_ref = jnp.asarray(g["feats"])
    n_total = x_ref.shape[0]

    adj_ref_np = np.zeros((num_dst, n_total), np.float32)
    adj_ref_np[g["dst"], g["src"]] = 1.0
    ref_gat = _gat_reference(x_ref, jnp.asarray(adj_ref_np), params["gat_w"],
                             params["attn_l"], params["attn_r"], params["gat_bias"], num_dst)

    num_rels = len(g["dst_rels"])
    adj_rel_np = np.zeros((num_rels, num_dst, n_total), np.float32)
    gidx = []
    for r, (rel_idx, s0, s1) in enumerate(g["rel_slices"]):
        np.add.at(adj_rel_np, (r, g["dst"][s0:s1], g["src"][s0:s1]), 1.0)
        gidx.append(rel_idx)
    w_rel_ref = jnp.einsum("rb,bfo->rfo", params["rgcn_comp"][np.asarray(gidx)],
                           params["rgcn_bases"])
    ref_rgcn = _rgcn_reference(x_ref, jnp.asarray(adj_rel_np), w_rel_ref,
                               params["rgcn_loop_w"], params["rgcn_bias"], num_dst)

    assert dst_z_gat.shape == (num_dst, num_heads * out_dim)
    assert dst_z_rgcn.shape == (num_dst, out_dim)
    assert att_sc.shape == (2,)
    np.testing.assert_allclose(np.asarray(dst_z_gat), np.asarray(ref_gat),
                               rtol=5e-2, atol=5e-2)
    np.testing.assert_allclose(np.asarray(dst_z_rgcn), np.asarray(ref_rgcn),
                               rtol=5e-2, atol=5e-2)
    print("KERNEL_OK")
</pallas_src>

<mosaic_0001>
module attributes {stable_mosaic.version = 11 : i64} {
  func.func @_gat_proj_kernel(%arg0: i32, %arg1: memref<128x32xf32, #tpu.memory_space<vmem>>, %arg2: memref<32x32xf32, #tpu.memory_space<vmem>>, %arg3: memref<2x32xf32, #tpu.memory_space<vmem>>, %arg4: memref<32x2xf32, #tpu.memory_space<vmem>>, %arg5: memref<128x32xbf16, #tpu.memory_space<vmem>>, %arg6: memref<2x128xf32, #tpu.memory_space<vmem>>, %arg7: memref<128x2xf32, #tpu.memory_space<vmem>>) attributes {dimension_semantics = [#tpu.dimension_semantics<parallel>], iteration_bounds = array<i64: 1>, scalar_prefetch = 0 : i64, scratch_operands = 0 : i64, tpu.core_type = #tpu.core_type<tc>, window_params = [{transform_indices = @transform_0, window_bounds = array<i64: 128, 32>}, {pipeline_mode = #tpu.pipeline_mode<synchronous>, transform_indices = @transform_1, window_bounds = array<i64: 32, 32>}, {pipeline_mode = #tpu.pipeline_mode<synchronous>, transform_indices = @transform_2, window_bounds = array<i64: 2, 32>}, {pipeline_mode = #tpu.pipeline_mode<synchronous>, transform_indices = @transform_3, window_bounds = array<i64: 32, 2>}, {transform_indices = @transform_4, window_bounds = array<i64: 128, 32>}, {transform_indices = @transform_5, window_bounds = array<i64: 2, 128>}, {transform_indices = @transform_6, window_bounds = array<i64: 128, 2>}]} {
    %c0 = arith.constant 0 : index
    %c0_0 = arith.constant 0 : index
    %0 = vector.load %arg1[%c0, %c0_0] : memref<128x32xf32, #tpu.memory_space<vmem>>, vector<128x32xf32>
    %1 = arith.truncf %0 : vector<128x32xf32> to vector<128x32xbf16>
    %c0_1 = arith.constant 0 : index
    %c0_2 = arith.constant 0 : index
    %2 = vector.load %arg2[%c0_1, %c0_2] : memref<32x32xf32, #tpu.memory_space<vmem>>, vector<32x32xf32>
    %3 = arith.truncf %2 : vector<32x32xf32> to vector<32x32xbf16>
    %cst = arith.constant dense<0.000000e+00> : vector<128x32xf32>
    %4 = tpu.matmul %1, %3, %cst {dimension_numbers = #tpu.dot_dimension_numbers<[1], [0], [0], [1], [0, 0, 1, 1], [], []>} : vector<128x32xbf16>, vector<32x32xbf16>, vector<128x32xf32> -> vector<128x32xf32>
    %5 = arith.truncf %4 : vector<128x32xf32> to vector<128x32xbf16>
    %c0_3 = arith.constant 0 : index
    %c0_4 = arith.constant 0 : index
    %6 = vector.load %arg5[%c0_3, %c0_4] : memref<128x32xbf16, #tpu.memory_space<vmem>>, vector<128x32xbf16>
    tpu.vector_store %arg5[%c0_3, %c0_4], %5 {strides = array<i32>} : memref<128x32xbf16, #tpu.memory_space<vmem>>, vector<128x32xbf16>,
    %c0_5 = arith.constant 0 : index
    %c0_6 = arith.constant 0 : index
    %7 = vector.load %arg3[%c0_5, %c0_6] : memref<2x32xf32, #tpu.memory_space<vmem>>, vector<2x32xf32>
    %cst_7 = arith.constant dense<0.000000e+00> : vector<2x128xf32>
    %8 = tpu.matmul %7, %4, %cst_7 {dimension_numbers = #tpu.dot_dimension_numbers<[1], [1], [0], [0], [0, 0, 1, 0], [], []>} : vector<2x32xf32>, vector<128x32xf32>, vector<2x128xf32> -> vector<2x128xf32>
    %c0_8 = arith.constant 0 : index
    %c0_9 = arith.constant 0 : index
    %9 = vector.load %arg6[%c0_8, %c0_9] : memref<2x128xf32, #tpu.memory_space<vmem>>, vector<2x128xf32>
    tpu.vector_store %arg6[%c0_8, %c0_9], %8 {strides = array<i32>} : memref<2x128xf32, #tpu.memory_space<vmem>>, vector<2x128xf32>,
    %c0_10 = arith.constant 0 : index
    %c0_11 = arith.constant 0 : index
    %10 = vector.load %arg4[%c0_10, %c0_11] : memref<32x2xf32, #tpu.memory_space<vmem>>, vector<32x2xf32>
    %cst_12 = arith.constant dense<0.000000e+00> : vector<128x2xf32>
    %11 = tpu.matmul %4, %10, %cst_12 {dimension_numbers = #tpu.dot_dimension_numbers<[1], [0], [0], [1], [0, 0, 1, 1], [], []>} : vector<128x32xf32>, vector<32x2xf32>, vector<128x2xf32> -> vector<128x2xf32>
    %c0_13 = arith.constant 0 : index
    %c0_14 = arith.constant 0 : index
    %12 = vector.load %arg7[%c0_13, %c0_14] : memref<128x2xf32, #tpu.memory_space<vmem>>, vector<128x2xf32>
    tpu.vector_store %arg7[%c0_13, %c0_14], %11 {strides = array<i32>} : memref<128x2xf32, #tpu.memory_space<vmem>>, vector<128x2xf32>,
    return
  }
  func.func @transform_0(%arg0: i32) -> (i32, i32) {
    %c0_i32 = arith.constant 0 : i32
    %c0_i32_0 = arith.constant 0 : i32
    return %arg0, %c0_i32 : i32, i32
  }
  func.func @transform_1(%arg0: i32) -> (i32, i32) {
    %c0_i32 = arith.constant 0 : i32
    %c0_i32_0 = arith.constant 0 : i32
    %c0_i32_1 = arith.constant 0 : i32
    return %c0_i32, %c0_i32_0 : i32, i32
  }
  func.func @transform_2(%arg0: i32) -> (i32, i32) {
    %c0_i32 = arith.constant 0 : i32
    %c0_i32_0 = arith.constant 0 : i32
    %c0_i32_1 = arith.constant 0 : i32
    return %c0_i32, %c0_i32_0 : i32, i32
  }
  func.func @transform_3(%arg0: i32) -> (i32, i32) {
    %c0_i32 = arith.constant 0 : i32
    %c0_i32_0 = arith.constant 0 : i32
    %c0_i32_1 = arith.constant 0 : i32
    return %c0_i32, %c0_i32_0 : i32, i32
  }
  func.func @transform_4(%arg0: i32) -> (i32, i32) {
    %c0_i32 = arith.constant 0 : i32
    %c0_i32_0 = arith.constant 0 : i32
    return %arg0, %c0_i32 : i32, i32
  }
  func.func @transform_5(%arg0: i32) -> (i32, i32) {
    %c0_i32 = arith.constant 0 : i32
    %c0_i32_0 = arith.constant 0 : i32
    return %c0_i32, %arg0 : i32, i32
  }
  func.func @transform_6(%arg0: i32) -> (i32, i32) {
    %c0_i32 = arith.constant 0 : i32
    %c0_i32_0 = arith.constant 0 : i32
    return %arg0, %c0_i32 : i32, i32
  }
}

</mosaic_0001>

<llo_original>
// kernel: tpu_custom_call.1
$region0: #{tpu_custom_call.1}
  #allocation0 [shape = 'u32[]', space=smem, size = 0x4, offset = 0x4, fixed_abs, tag = 'smem constant byte address 0x4 - core index']
  #allocation1 [shape = 'u32[72,128]{1,0:T(1,128)}', space=vmem, size = 0x9000, scoped, tag = 'internal scratch']
  %s0 = inlined_call_operand.vmem [shape: f32[128,32], index: 0, kind: input, shape index: {}]
  %s1 = inlined_call_operand.vmem [shape: f32[32,32], index: 1, kind: input, shape index: {}]
  %s2 = inlined_call_operand.vmem [shape: f32[2,32], index: 2, kind: input, shape index: {}]
  %s3 = inlined_call_operand.vmem [shape: f32[32,2], index: 3, kind: input, shape index: {}]
  %s4 = inlined_call_operand.vmem [shape: bf16[128,32], index: 4, kind: output, shape index: {0}]
  %s5 = inlined_call_operand.hbm [shape: f32[2,128], index: 5, kind: output, shape index: {1}]
  %s6 = inlined_call_operand.vmem [shape: f32[128,2], index: 6, kind: output, shape index: {2}]
  %7 = xla_tuple %s4, %s5, %s6
  %s8 = sld [smem:[#allocation0]]
  $region42: #{tpu_custom_call.1} parent=0
    _
  %s10 = ssub.s32 1, %s8
  %s11 = scalar_select 0, %s10, %s8
  $region1: #{tpu_custom_call.1} parent=0
    #allocation2 [shape = 'u8[1024]{0}', space=vmem, size = 0x400, scoped, tag = 'output window, operand 1, single buffered']
    #allocation3 [shape = 's32[1]{0}', space=sflag, size = 0x4, scoped, tag = 'scoped memory for tpu_custom_call.1']
    %12 = vsyncpa [#allocation3], 0
    // Predicated region
    $region2: #{tpu_custom_call.1} parent=1 // pred_check
      _
    $region3: #{tpu_custom_call.1} parent=1 // pred_check_branch
      %14 = sbr.rel (0) target = $region5
    $region4: #{tpu_custom_call.1} parent=1 // pred_region
      _
    $region5: #{tpu_custom_call.1} parent=1 // pred_fallthru
      _
    // Predicated region
    $region6: #{tpu_custom_call.1} parent=1 // pred_check
      _
    $region7: #{tpu_custom_call.1} parent=1 // pred_check_branch
      %16 = sbr.rel (0) target = $region9
    $region8: #{tpu_custom_call.1} parent=1 // pred_region
      _
    $region9: #{tpu_custom_call.1} parent=1 // pred_fallthru
      _
    // Predicated region
    $region10: #{tpu_custom_call.1} parent=1 // pred_check
      _
    $region11: #{tpu_custom_call.1} parent=1 // pred_check_branch
      %18 = sbr.rel (0) target = $region13
    $region12: #{tpu_custom_call.1} parent=1 // pred_region
      _
    $region13: #{tpu_custom_call.1} parent=1 // pred_fallthru
      _
    // Predicated region
    $region14: #{tpu_custom_call.1} parent=1 // pred_check
      _
    $region15: #{tpu_custom_call.1} parent=1 // pred_check_branch
      %20 = sbr.rel (0) target = $region17
    $region16: #{tpu_custom_call.1} parent=1 // pred_region
      _
    $region17: #{tpu_custom_call.1} parent=1 // pred_fallthru
      _
    %v22 = vld [vmem:[%s0] sm:$0xff]
    %v23 = vld [vmem:[%s0 + $0x8] sm:$0xff]
    %v24 = vld [vmem:[%s0 + $0x10] sm:$0xff]
    %v25 = vld [vmem:[%s0 + $0x18] sm:$0xff]
    %v26 = vld [vmem:[%s0 + $0x20] sm:$0xff]
    %v27 = vld [vmem:[%s0 + $0x28] sm:$0xff]
    %v28 = vld [vmem:[%s0 + $0x30] sm:$0xff]
    %v29 = vld [vmem:[%s0 + $0x38] sm:$0xff]
    %v30 = vld [vmem:[%s0 + $0x40] sm:$0xff]
    %v31 = vld [vmem:[%s0 + $0x48] sm:$0xff]
    %v32 = vld [vmem:[%s0 + $0x50] sm:$0xff]
    %v33 = vld [vmem:[%s0 + $0x58] sm:$0xff]
    %v34 = vld [vmem:[%s0 + $0x60] sm:$0xff]
    %v35 = vld [vmem:[%s0 + $0x68] sm:$0xff]
    %v36 = vld [vmem:[%s0 + $0x70] sm:$0xff]
    %v37 = vld [vmem:[%s0 + $0x78] sm:$0xff]
    %v38 = vpack.c.bf16 %v23, %v22
    %v39 = vpack.c.bf16 %v25, %v24
    %v40 = vpack.c.bf16 %v27, %v26
    %v41 = vpack.c.bf16 %v29, %v28
    %v42 = vpack.c.bf16 %v31, %v30
    %v43 = vpack.c.bf16 %v33, %v32
    %v44 = vpack.c.bf16 %v35, %v34
    %v45 = vpack.c.bf16 %v37, %v36
    %v46 = vld [vmem:[%s1] sm:$0xff]
    %v47 = vld [vmem:[%s1 + $0x8] sm:$0xff]
    %v48 = vld [vmem:[%s1 + $0x10] sm:$0xff]
    %v49 = vld [vmem:[%s1 + $0x18] sm:$0xff]
    %v50 = vpack.c.bf16 %v47, %v46
    %v51 = vpack.c.bf16 %v49, %v48
    %vm52 = vcmask 261120
    %v54 = vsel %vm52, %v38, 0
    %v57 = vsel %vm52, %v39, 0
    %v60 = vsel %vm52, %v40, 0
    %v63 = vsel %vm52, %v41, 0
    %v66 = vsel %vm52, %v42, 0
    %v69 = vsel %vm52, %v43, 0
    %v72 = vsel %vm52, %v44, 0
    %v75 = vsel %vm52, %v45, 0
    %77 = vmatpush.bf16.msra.mxu0 0
    %78 = vmatpush.bf16.msra.mxu0 0
    %79 = vmatpush.bf16.msra.mxu0 0
    %80 = vmatpush.bf16.msra.mxu0 0
    %81 = vmatpush.bf16.msra.mxu0 0
    %82 = vmatpush.bf16.msra.mxu0 0
    %83 = vmatpush.bf16.msra.mxu0 %v51
    %84 = vmatpush.bf16.msra.mxu0 %v50
    %85 = vmatmul.bf16.gmra.mxu0 %v54
    %v86 = vpop.f32.mrf.mxu0
    %v87 = vadd.f32 0.0, %v86
    %v88 = vpop.f32.mrf.mxu0
    %v89 = vadd.f32 0.0, %v88
    %90 = vmatmul.bf16.gmra.mxu0 %v57
    %v91 = vpop.f32.mrf.mxu0
    %v92 = vadd.f32 0.0, %v91
    %v93 = vpop.f32.mrf.mxu0
    %v94 = vadd.f32 0.0, %v93
    %95 = vmatmul.bf16.gmra.mxu0 %v60
    %v96 = vpop.f32.mrf.mxu0
    %v97 = vadd.f32 0.0, %v96
    %v98 = vpop.f32.mrf.mxu0
    %v99 = vadd.f32 0.0, %v98
    %100 = vmatmul.bf16.gmra.mxu0 %v63
    %v101 = vpop.f32.mrf.mxu0
    %v102 = vadd.f32 0.0, %v101
    %v103 = vpop.f32.mrf.mxu0
    %v104 = vadd.f32 0.0, %v103
    %105 = vmatmul.bf16.gmra.mxu0 %v66
    %v106 = vpop.f32.mrf.mxu0
    %v107 = vadd.f32 0.0, %v106
    %v108 = vpop.f32.mrf.mxu0
    %v109 = vadd.f32 0.0, %v108
    %110 = vmatmul.bf16.gmra.mxu0 %v69
    %v111 = vpop.f32.mrf.mxu0
    %v112 = vadd.f32 0.0, %v111
    %v113 = vpop.f32.mrf.mxu0
    %v114 = vadd.f32 0.0, %v113
    %115 = vmatmul.bf16.gmra.mxu0 %v72
    %v116 = vpop.f32.mrf.mxu0
    %v117 = vadd.f32 0.0, %v116
    %v118 = vpop.f32.mrf.mxu0
    %v119 = vadd.f32 0.0, %v118
    %120 = vmatmul.bf16.gmra.mxu0 %v75
    %v121 = vpop.f32.mrf.mxu0
    %v122 = vadd.f32 0.0, %v121
    %v123 = vpop.f32.mrf.mxu0
    %v124 = vadd.f32 0.0, %v123
    %125 = vdwg.mxu0
    %v126 = vpack.c.bf16 %v87, %v87
    %v127 = vpack.c.bf16 %v89, %v89
    %v128 = vpack.c.bf16 %v92, %v92
    %v129 = vpack.c.bf16 %v94, %v94
    %v130 = vpack.c.bf16 %v97, %v97
    %v131 = vpack.c.bf16 %v99, %v99
    %v132 = vpack.c.bf16 %v102, %v102
    %v133 = vpack.c.bf16 %v104, %v104
    %v134 = vpack.c.bf16 %v107, %v107
    %v135 = vpack.c.bf16 %v109, %v109
    %v136 = vpack.c.bf16 %v112, %v112
    %v137 = vpack.c.bf16 %v114, %v114
    %v138 = vpack.c.bf16 %v117, %v117
    %v139 = vpack.c.bf16 %v119, %v119
    %v140 = vpack.c.bf16 %v122, %v122
    %v141 = vpack.c.bf16 %v124, %v124
    %vm142 = vcmask 257024
    %143 = vst.msk [vmem:[%s4] sm:$0xf] %vm142, %v126
    %144 = vst.msk [vmem:[%s4 + $0x4] sm:$0xf] %vm142, %v127
    %145 = vst.msk [vmem:[%s4 + $0x8] sm:$0xf] %vm142, %v128
    %146 = vst.msk [vmem:[%s4 + $0xc] sm:$0xf] %vm142, %v129
    %147 = vst.msk [vmem:[%s4 + $0x10] sm:$0xf] %vm142, %v130
    %148 = vst.msk [vmem:[%s4 + $0x14] sm:$0xf] %vm142, %v131
    %149 = vst.msk [vmem:[%s4 + $0x18] sm:$0xf] %vm142, %v132
    %150 = vst.msk [vmem:[%s4 + $0x1c] sm:$0xf] %vm142, %v133
    %151 = vst.msk [vmem:[%s4 + $0x20] sm:$0xf] %vm142, %v134
    %152 = vst.msk [vmem:[%s4 + $0x24] sm:$0xf] %vm142, %v135
    %153 = vst.msk [vmem:[%s4 + $0x28] sm:$0xf] %vm142, %v136
    %154 = vst.msk [vmem:[%s4 + $0x2c] sm:$0xf] %vm142, %v137
    %155 = vst.msk [vmem:[%s4 + $0x30] sm:$0xf] %vm142, %v138
    %156 = vst.msk [vmem:[%s4 + $0x34] sm:$0xf] %vm142, %v139
    %157 = vst.msk [vmem:[%s4 + $0x38] sm:$0xf] %vm142, %v140
    %158 = vst.msk [vmem:[%s4 + $0x3c] sm:$0xf] %vm142, %v141
    %v159 = vld [vmem:[%s2] sm:$0x3]
    %v161 = vsel %vm52, %v159, 0
    %v164 = vsel %vm52, %v87, 0
    %v167 = vsel %vm52, %v89, 0
    %v170 = vsel %vm52, %v92, 0
    %v173 = vsel %vm52, %v94, 0
    %v176 = vsel %vm52, %v97, 0
    %v179 = vsel %vm52, %v99, 0
    %v182 = vsel %vm52, %v102, 0
    %v185 = vsel %vm52, %v104, 0
    %v188 = vsel %vm52, %v107, 0
    %v191 = vsel %vm52, %v109, 0
    %v194 = vsel %vm52, %v112, 0
    %v197 = vsel %vm52, %v114, 0
    %v200 = vsel %vm52, %v117, 0
    %v203 = vsel %vm52, %v119, 0
    %v206 = vsel %vm52, %v122, 0
    %v209 = vsel %vm52, %v124, 0
    %211 = vmatpush.xpose.msra.mxu0 %v209
    %212 = vmatpush.xpose.msra.mxu0 %v206
    %213 = vmatpush.xpose.msra.mxu0 %v203
    %214 = vmatpush.xpose.msra.mxu0 %v200
    %215 = vmatpush.xpose.msra.mxu0 %v197
    %216 = vmatpush.xpose.msra.mxu0 %v194
    %217 = vmatpush.xpose.msra.mxu0 %v191
    %218 = vmatpush.xpose.msra.mxu0 %v188
    %219 = vmatpush.xpose.msra.mxu0 %v185
    %220 = vmatpush.xpose.msra.mxu0 %v182
    %221 = vmatpush.xpose.msra.mxu0 %v179
    %222 = vmatpush.xpose.msra.mxu0 %v176
    %223 = vmatpush.xpose.msra.mxu0 %v173
    %224 = vmatpush.xpose.msra.mxu0 %v170
    %225 = vmatpush.xpose.msra.mxu0 %v167
    %226 = vmatpush.xpose.msra.mxu0 %v164
    %227 = vmatmul.f32.gmra.mxu0 %v161
    %v228 = vpop.f32.mrf.mxu0
    %v229 = vadd.f32 0.0, %v228
    %230 = vdwg.mxu0
    %231 = vst [vmem:[#allocation2] sm:$0x3] %v229
    %v232 = vld [vmem:[%s3] sm:$0xff]
    %v233 = vld [vmem:[%s3 + $0x8] sm:$0xff]
    %v234 = vld [vmem:[%s3 + $0x10] sm:$0xff]
    %v235 = vld [vmem:[%s3 + $0x18] sm:$0xff]
    %236 = vmatpush.msra.mxu0 0.0
    %237 = vmatpush.msra.mxu0 0.0
    %238 = vmatpush.msra.mxu0 0.0
    %239 = vmatpush.msra.mxu0 0.0
    %240 = vmatpush.msra.mxu0 0.0
    %241 = vmatpush.msra.mxu0 0.0
    %242 = vmatpush.msra.mxu0 0.0
    %243 = vmatpush.msra.mxu0 0.0
    %244 = vmatpush.msra.mxu0 0.0
    %245 = vmatpush.msra.mxu0 0.0
    %246 = vmatpush.msra.mxu0 0.0
    %247 = vmatpush.msra.mxu0 0.0
    %248 = vmatpush.msra.mxu0 %v235
    %249 = vmatpush.msra.mxu0 %v234
    %250 = vmatpush.msra.mxu0 %v233
    %251 = vmatpush.msra.mxu0 %v232
    %252 = vmatmul.f32.gmra.mxu0 %v164
    %v253 = vpop.f32.mrf.mxu0
    %v254 = vadd.f32 0.0, %v253
    %255 = vmatmul.f32.gmra.mxu0 %v167
    %v256 = vpop.f32.mrf.mxu0
    %v257 = vadd.f32 0.0, %v256
    %258 = vmatmul.f32.gmra.mxu0 %v170
    %v259 = vpop.f32.mrf.mxu0
    %v260 = vadd.f32 0.0, %v259
    %261 = vmatmul.f32.gmra.mxu0 %v173
    %v262 = vpop.f32.mrf.mxu0
    %v263 = vadd.f32 0.0, %v262
    %264 = vmatmul.f32.gmra.mxu0 %v176
    %v265 = vpop.f32.mrf.mxu0
    %v266 = vadd.f32 0.0, %v265
    %267 = vmatmul.f32.gmra.mxu0 %v179
    %v268 = vpop.f32.mrf.mxu0
    %v269 = vadd.f32 0.0, %v268
    %270 = vmatmul.f32.gmra.mxu0 %v182
    %v271 = vpop.f32.mrf.mxu0
    %v272 = vadd.f32 0.0, %v271
    %273 = vmatmul.f32.gmra.mxu0 %v185
    %v274 = vpop.f32.mrf.mxu0
    %v275 = vadd.f32 0.0, %v274
    %276 = vmatmul.f32.gmra.mxu0 %v188
    %v277 = vpop.f32.mrf.mxu0
    %v278 = vadd.f32 0.0, %v277
    %279 = vmatmul.f32.gmra.mxu0 %v191
    %v280 = vpop.f32.mrf.mxu0
    %v281 = vadd.f32 0.0, %v280
    %282 = vmatmul.f32.gmra.mxu0 %v194
    %v283 = vpop.f32.mrf.mxu0
    %v284 = vadd.f32 0.0, %v283
    %285 = vmatmul.f32.gmra.mxu0 %v197
    %v286 = vpop.f32.mrf.mxu0
    %v287 = vadd.f32 0.0, %v286
    %288 = vmatmul.f32.gmra.mxu0 %v200
    %v289 = vpop.f32.mrf.mxu0
    %v290 = vadd.f32 0.0, %v289
    %291 = vmatmul.f32.gmra.mxu0 %v203
    %v292 = vpop.f32.mrf.mxu0
    %v293 = vadd.f32 0.0, %v292
    %294 = vmatmul.f32.gmra.mxu0 %v206
    %v295 = vpop.f32.mrf.mxu0
    %v296 = vadd.f32 0.0, %v295
    %297 = vmatmul.f32.gmra.mxu0 %v209
    %v298 = vpop.f32.mrf.mxu0
    %v299 = vadd.f32 0.0, %v298
    %300 = vdwg.mxu0
    %vm301 = vcmask 15360
    %302 = vst.msk [vmem:[%s6] sm:$0xff] %vm301, %v254
    %303 = vst.msk [vmem:[%s6 + $0x8] sm:$0xff] %vm301, %v257
    %304 = vst.msk [vmem:[%s6 + $0x10] sm:$0xff] %vm301, %v260
    %305 = vst.msk [vmem:[%s6 + $0x18] sm:$0xff] %vm301, %v263
    %306 = vst.msk [vmem:[%s6 + $0x20] sm:$0xff] %vm301, %v266
    %307 = vst.msk [vmem:[%s6 + $0x28] sm:$0xff] %vm301, %v269
    %308 = vst.msk [vmem:[%s6 + $0x30] sm:$0xff] %vm301, %v272
    %309 = vst.msk [vmem:[%s6 + $0x38] sm:$0xff] %vm301, %v275
    %310 = vst.msk [vmem:[%s6 + $0x40] sm:$0xff] %vm301, %v278
    %311 = vst.msk [vmem:[%s6 + $0x48] sm:$0xff] %vm301, %v281
    %312 = vst.msk [vmem:[%s6 + $0x50] sm:$0xff] %vm301, %v284
    %313 = vst.msk [vmem:[%s6 + $0x58] sm:$0xff] %vm301, %v287
    %314 = vst.msk [vmem:[%s6 + $0x60] sm:$0xff] %vm301, %v290
    %315 = vst.msk [vmem:[%s6 + $0x68] sm:$0xff] %vm301, %v293
    %316 = vst.msk [vmem:[%s6 + $0x70] sm:$0xff] %vm301, %v296
    %317 = vst.msk [vmem:[%s6 + $0x78] sm:$0xff] %vm301, %v299
    // Predicated region
    $region18: #{tpu_custom_call.1} parent=1 // pred_check
      _
    $region19: #{tpu_custom_call.1} parent=1 // pred_check_branch
      %319 = sbr.rel (0) target = $region21
    $region20: #{tpu_custom_call.1} parent=1 // pred_region
      _
    $region21: #{tpu_custom_call.1} parent=1 // pred_fallthru
      _
    // Predicated region
    $region22: #{tpu_custom_call.1} parent=1 // pred_check
      _
    $region23: #{tpu_custom_call.1} parent=1 // pred_check_branch
      %321 = sbr.rel (0) target = $region25
    $region24: #{tpu_custom_call.1} parent=1 // pred_region
      %323 = vsyncadd [#allocation3], 0
      %s325 = sshll.u32 [#allocation2], 4
      %s326 = int_to_ptr.vmem [resolvable:$true] %s325
      %s327 = sshll.u32 %s5, 4
      %s328 = int_to_ptr.hbm [resolvable:$true] %s327
      %330 = dma.vmem_to_hbm [thread:$0]  %s326, 32, %s328, [#allocation3]
    $region25: #{tpu_custom_call.1} parent=1 // pred_fallthru
      _
    // Predicated region
    $region26: #{tpu_custom_call.1} parent=1 // pred_check
      _
    $region27: #{tpu_custom_call.1} parent=1 // pred_check_branch
      %332 = sbr.rel (0) target = $region29
    $region28: #{tpu_custom_call.1} parent=1 // pred_region
      _
    $region29: #{tpu_custom_call.1} parent=1 // pred_fallthru
      _
    // Predicated region
    $region30: #{tpu_custom_call.1} parent=1 // pred_check
      _
    $region31: #{tpu_custom_call.1} parent=1 // pred_check_branch
      %334 = sbr.rel (0) target = $region33
    $region32: #{tpu_custom_call.1} parent=1 // pred_region
      _
    $region33: #{tpu_custom_call.1} parent=1 // pred_fallthru
      _
    // Predicated region
    $region34: #{tpu_custom_call.1} parent=1 // pred_check
      _
    $region35: #{tpu_custom_call.1} parent=1 // pred_check_branch
      %336 = sbr.rel (0) target = $region37
    $region36: #{tpu_custom_call.1} parent=1 // pred_region
      %338 = dma.done [#allocation3], 32
    $region37: #{tpu_custom_call.1} parent=1 // pred_fallthru
      _
    // Predicated region
    $region38: #{tpu_custom_call.1} parent=1 // pred_check
      _
    $region39: #{tpu_custom_call.1} parent=1 // pred_check_branch
      %340 = sbr.rel (0) target = $region41
    $region40: #{tpu_custom_call.1} parent=1 // pred_region
      _
    $region41: #{tpu_custom_call.1} parent=1 // pred_fallthru
      _
    %341 = vsyncpa [#allocation3], 1

</llo_original>
